<compile_context>
chip_gen: v5e
topology: v5e:2x2
jax: 0.10.0
libtpu: 0.0.40
codegen_flags: <defaults>
</compile_context>

<pallas_src>
import functools

import jax
import jax.numpy as jnp
import numpy as np
from jax.experimental import pallas as pl
from jax.experimental.pallas import tpu as pltpu

LN_EPS = 1e-5


def _round_up(x, m):
    return ((x + m - 1) // m) * m


def gene_id_emb_kernel(idx_ref, table_ref, out_ref, *, n_token, pack):
    # idx_ref:   (tile_rows, pack) int32  -- `pack` token ids per output row
    # table_ref: (pack*n_token, pack*D) f32, block-diagonal LayerNorm'd table
    # out_ref:   (tile_rows, pack*D)      -- lane-dense (pack*D == 128 here)
    rows = idx_ref.shape[0]
    k = pack * n_token

    lane = jax.lax.broadcasted_iota(jnp.int32, (rows, k), 1)
    one_hot = jnp.zeros((rows, k), jnp.float32)
    for g in range(pack):  # static unroll; groups are disjoint lane ranges
        target = idx_ref[:, g:g + 1] + g * n_token          # (rows, 1)
        one_hot = one_hot + (lane == target).astype(jnp.float32)

    # Pure gather on the MXU: one matmul produces `pack` tokens per 128-lane
    # output row (block-diagonal table routes group g to columns g*D:(g+1)*D).
    out_ref[...] = jnp.dot(one_hot, table_ref[...],
                           preferred_element_type=jnp.float32
                           ).astype(out_ref.dtype)


def gene_id_emb(idx, table, gamma, beta, *, tile_tokens=2048,
                out_dtype=jnp.float32):
    """idx: (B, S) int; table: (n_token, D); returns (B, S, D).

    tile_tokens: tokens per grid step (multiple of 8*pack recommended).
    out_dtype:   jnp.float32 (default, matches the module) or jnp.bfloat16.
    """
    B, S = idx.shape
    n_token, D = table.shape
    N = B * S

    # Pack `pack` tokens per 128-lane output row when D divides 128.
    pack = 128 // D if (D < 128 and 128 % D == 0) else 1
    row_align = 8 * pack                      # token-count alignment per tile

    # --- Hoist LayerNorm (and its affine) onto the table: exact two-pass f32.
    table_f32 = table.astype(jnp.float32)
    mean = jnp.mean(table_f32, axis=-1, keepdims=True)
    var = jnp.mean((table_f32 - mean) ** 2, axis=-1, keepdims=True)
    table_ln = ((table_f32 - mean) * jax.lax.rsqrt(var + LN_EPS)
                * gamma.reshape(1, D).astype(jnp.float32)
                + beta.reshape(1, D).astype(jnp.float32))

    # Block-diagonal expansion so a single matmul writes `pack` tokens into
    # one lane-dense 128-wide output row.
    if pack > 1:
        eye = jnp.eye(pack, dtype=jnp.float32)
        table_k = jnp.einsum('gh,tj->gthj', eye, table_ln).reshape(
            pack * n_token, pack * D)
    else:
        table_k = table_ln
    k_cols = pack * n_token
    out_cols = pack * D

    # --- Tiling: big token tiles; >= 2 balanced grid steps once N > tile so
    # the "parallel" row axis can shard across v7x's two TensorCores.
    n_steps = 1 if N <= tile_tokens else -(-N // tile_tokens)
    tile_eff = _round_up(-(-N // n_steps), row_align)
    N_pad = n_steps * tile_eff
    tile_rows = tile_eff // pack

    idx_flat = idx.reshape(N).astype(jnp.int32)
    if N_pad != N:
        idx_flat = jnp.concatenate(
            [idx_flat, jnp.zeros((N_pad - N,), jnp.int32)])
    idx_packed = idx_flat.reshape(N_pad // pack, pack)

    # --- VMEM budget: honest lane/sublane-padded footprint, ~2x headroom.
    lane_pad = lambda c: _round_up(c, 128)
    sub_pad = lambda r: _round_up(r, 8)
    f32b = 4
    out_b = jnp.dtype(out_dtype).itemsize
    vmem_est = (
        2 * tile_rows * lane_pad(pack) * f32b                 # idx (2 bufs)
        + 2 * tile_rows * lane_pad(out_cols) * out_b          # out (2 bufs)
        + 2 * sub_pad(k_cols) * lane_pad(out_cols) * f32b     # table (2 bufs)
        + 3 * tile_rows * lane_pad(k_cols) * f32b             # one-hot temps
    )
    vmem_limit = int(min(max(2 * vmem_est, 8 << 20), 48 << 20))

    kernel = functools.partial(gene_id_emb_kernel, n_token=n_token, pack=pack)

    out_packed = pl.pallas_call(
        kernel,
        out_shape=jax.ShapeDtypeStruct((N_pad // pack, out_cols), out_dtype),
        grid=(n_steps,),
        in_specs=[
            pl.BlockSpec((tile_rows, pack), lambda i: (i, 0)),     # idx rows
            pl.BlockSpec((k_cols, out_cols), lambda i: (0, 0)),    # LN table
        ],
        out_specs=pl.BlockSpec((tile_rows, out_cols), lambda i: (i, 0)),
        compiler_params=pltpu.CompilerParams(
            dimension_semantics=("parallel",),
            vmem_limit_bytes=vmem_limit,
        ),
    )(idx_packed, table_k)

    # Packed rows are row-major [tok 4r | tok 4r+1 | ...], so this reshape is
    # a free bitcast back to per-token embeddings.
    return out_packed.reshape(N_pad, D)[:N].reshape(B, S, D)


def gene_id_emb_ref(idx, table, gamma, beta):
    emb = jnp.take(table, idx, axis=0).astype(jnp.float32)
    mean = jnp.mean(emb, axis=-1, keepdims=True)
    var = jnp.mean((emb - mean) ** 2, axis=-1, keepdims=True)
    normed = (emb - mean) * jax.lax.rsqrt(var + LN_EPS)
    return normed * gamma + beta


if __name__ == "__main__":
    # args.gid_dim = 32, args.n_token = 64
    key = jax.random.PRNGKey(0)
    k_tab, k_idx, k_idx2, k_g, k_b = jax.random.split(key, 5)

    n_token, gid_dim = 64, 32

    # nn.Embedding default init: N(0, 1); nn.LayerNorm default: weight=1, bias=0
    table = jax.random.normal(k_tab, (n_token, gid_dim), dtype=jnp.float32)
    gamma = jnp.ones((gid_dim,), dtype=jnp.float32)
    beta = jnp.zeros((gid_dim,), dtype=jnp.float32)

    # --- small case (single grid step): batch=2, seq=8 ---
    B, S = 2, 8
    idx = jax.random.randint(k_idx, (B, S), 0, n_token, dtype=jnp.int32)
    out = jax.block_until_ready(gene_id_emb(idx, table, gamma, beta))
    ref = gene_id_emb_ref(idx, table, gamma, beta)
    np.testing.assert_allclose(np.asarray(out), np.asarray(ref),
                               rtol=1e-5, atol=1e-5)

    # --- multi-step grid + tail padding, non-trivial LN affine ---
    gamma2 = jax.random.normal(k_g, (gid_dim,), dtype=jnp.float32)
    beta2 = jax.random.normal(k_b, (gid_dim,), dtype=jnp.float32)
    B2, S2 = 3, 200   # N = 600; tile_tokens=256 -> 3 balanced grid steps
    idx2 = jax.random.randint(k_idx2, (B2, S2), 0, n_token, dtype=jnp.int32)
    out2 = jax.block_until_ready(
        gene_id_emb(idx2, table, gamma2, beta2, tile_tokens=256))
    ref2 = gene_id_emb_ref(idx2, table, gamma2, beta2)
    np.testing.assert_allclose(np.asarray(out2), np.asarray(ref2),
                               rtol=1e-5, atol=1e-5)

    print("KERNEL_OK")
</pallas_src>

<mosaic_0001>
module attributes {stable_mosaic.version = 11 : i64} {
  func.func @gene_id_emb_kernel(%arg0: i32, %arg1: memref<8x4xi32, #tpu.memory_space<vmem>>, %arg2: memref<256x128xf32, #tpu.memory_space<vmem>>, %arg3: memref<8x128xf32, #tpu.memory_space<vmem>>) attributes {dimension_semantics = [#tpu.dimension_semantics<parallel>], iteration_bounds = array<i64: 1>, scalar_prefetch = 0 : i64, scratch_operands = 0 : i64, tpu.core_type = #tpu.core_type<tc>, window_params = [{transform_indices = @transform_0, window_bounds = array<i64: 8, 4>}, {pipeline_mode = #tpu.pipeline_mode<synchronous>, transform_indices = @transform_1, window_bounds = array<i64: 256, 128>}, {transform_indices = @transform_2, window_bounds = array<i64: 8, 128>}]} {
    %0 = tpu.iota {dimensions = array<i32: 1>} : vector<8x256xi32>
    %cst = arith.constant 0.000000e+00 : f32
    %1 = vector.broadcast %cst : f32 to vector<8x256xf32>
    %c0 = arith.constant 0 : index
    %c0_0 = arith.constant 0 : index
    %2 = vector.load %arg1[%c0, %c0_0] : memref<8x4xi32, #tpu.memory_space<vmem>>, vector<8x1xi32>
    %c0_i32 = arith.constant 0 : i32
    %3 = vector.broadcast %c0_i32 : i32 to vector<8x1xi32>
    %4 = arith.addi %2, %3 : vector<8x1xi32>
    %5 = vector.broadcast %4 : vector<8x1xi32> to vector<8x256xi32>
    %6 = arith.cmpi eq, %0, %5 : vector<8x256xi32>
    %7 = arith.extui %6 : vector<8x256xi1> to vector<8x256xi32>
    %8 = arith.sitofp %7 : vector<8x256xi32> to vector<8x256xf32>
    %9 = arith.addf %1, %8 : vector<8x256xf32>
    %c0_1 = arith.constant 0 : index
    %c1 = arith.constant 1 : index
    %10 = vector.load %arg1[%c0_1, %c1] : memref<8x4xi32, #tpu.memory_space<vmem>>, vector<8x1xi32>
    %c64_i32 = arith.constant 64 : i32
    %11 = vector.broadcast %c64_i32 : i32 to vector<8x1xi32>
    %12 = arith.addi %10, %11 : vector<8x1xi32>
    %13 = vector.broadcast %12 : vector<8x1xi32> to vector<8x256xi32>
    %14 = arith.cmpi eq, %0, %13 : vector<8x256xi32>
    %15 = arith.extui %14 : vector<8x256xi1> to vector<8x256xi32>
    %16 = arith.sitofp %15 : vector<8x256xi32> to vector<8x256xf32>
    %17 = arith.addf %9, %16 : vector<8x256xf32>
    %c0_2 = arith.constant 0 : index
    %c2 = arith.constant 2 : index
    %18 = vector.load %arg1[%c0_2, %c2] : memref<8x4xi32, #tpu.memory_space<vmem>>, vector<8x1xi32>
    %c128_i32 = arith.constant 128 : i32
    %19 = vector.broadcast %c128_i32 : i32 to vector<8x1xi32>
    %20 = arith.addi %18, %19 : vector<8x1xi32>
    %21 = vector.broadcast %20 : vector<8x1xi32> to vector<8x256xi32>
    %22 = arith.cmpi eq, %0, %21 : vector<8x256xi32>
    %23 = arith.extui %22 : vector<8x256xi1> to vector<8x256xi32>
    %24 = arith.sitofp %23 : vector<8x256xi32> to vector<8x256xf32>
    %25 = arith.addf %17, %24 : vector<8x256xf32>
    %c0_3 = arith.constant 0 : index
    %c3 = arith.constant 3 : index
    %26 = vector.load %arg1[%c0_3, %c3] : memref<8x4xi32, #tpu.memory_space<vmem>>, vector<8x1xi32>
    %c192_i32 = arith.constant 192 : i32
    %27 = vector.broadcast %c192_i32 : i32 to vector<8x1xi32>
    %28 = arith.addi %26, %27 : vector<8x1xi32>
    %29 = vector.broadcast %28 : vector<8x1xi32> to vector<8x256xi32>
    %30 = arith.cmpi eq, %0, %29 : vector<8x256xi32>
    %31 = arith.extui %30 : vector<8x256xi1> to vector<8x256xi32>
    %32 = arith.sitofp %31 : vector<8x256xi32> to vector<8x256xf32>
    %33 = arith.addf %25, %32 : vector<8x256xf32>
    %c0_4 = arith.constant 0 : index
    %c0_5 = arith.constant 0 : index
    %34 = vector.load %arg2[%c0_4, %c0_5] : memref<256x128xf32, #tpu.memory_space<vmem>>, vector<256x128xf32>
    %cst_6 = arith.constant dense<0.000000e+00> : vector<8x128xf32>
    %35 = tpu.matmul %33, %34, %cst_6 {dimension_numbers = #tpu.dot_dimension_numbers<[1], [0], [0], [1], [0, 0, 1, 1], [], []>} : vector<8x256xf32>, vector<256x128xf32>, vector<8x128xf32> -> vector<8x128xf32>
    %c0_7 = arith.constant 0 : index
    %c0_8 = arith.constant 0 : index
    %36 = vector.load %arg3[%c0_7, %c0_8] : memref<8x128xf32, #tpu.memory_space<vmem>>, vector<8x128xf32>
    tpu.vector_store %arg3[%c0_7, %c0_8], %35 {strides = array<i32>} : memref<8x128xf32, #tpu.memory_space<vmem>>, vector<8x128xf32>,
    return
  }
  func.func @transform_0(%arg0: i32) -> (i32, i32) {
    %c0_i32 = arith.constant 0 : i32
    %c0_i32_0 = arith.constant 0 : i32
    return %arg0, %c0_i32 : i32, i32
  }
  func.func @transform_1(%arg0: i32) -> (i32, i32) {
    %c0_i32 = arith.constant 0 : i32
    %c0_i32_0 = arith.constant 0 : i32
    %c0_i32_1 = arith.constant 0 : i32
    return %c0_i32, %c0_i32_0 : i32, i32
  }
  func.func @transform_2(%arg0: i32) -> (i32, i32) {
    %c0_i32 = arith.constant 0 : i32
    %c0_i32_0 = arith.constant 0 : i32
    return %arg0, %c0_i32 : i32, i32
  }
}

</mosaic_0001>

<llo_original>
// kernel: tpu_custom_call.1
$region0: #{tpu_custom_call.1}
  #allocation0 [shape = 'u32[]', space=smem, size = 0x4, offset = 0x4, fixed_abs, tag = 'smem constant byte address 0x4 - core index']
  #allocation1 [shape = 'u32[72,128]{1,0:T(1,128)}', space=vmem, size = 0x9000, scoped, tag = 'internal scratch']
  %s0 = inlined_call_operand.vmem [shape: s32[8,4], index: 0, kind: input, shape index: {}]
  %s1 = inlined_call_operand.hbm [shape: f32[256,128], index: 1, kind: input, shape index: {}]
  %s2 = inlined_call_operand.hbm [shape: f32[8,128], index: 2, kind: output, shape index: {}]
  %s3 = sld [smem:[#allocation0]]
  $region22: #{tpu_custom_call.1} parent=0
    _
  %s5 = ssub.s32 1, %s3
  %s6 = scalar_select 0, %s5, %s3
  $region1: #{tpu_custom_call.1} parent=0
    #allocation2 [shape = 'u8[131072]{0}', space=vmem, size = 0x20000, scoped, tag = 'input window, operand 1, single buffered']
    #allocation3 [shape = 's32[1]{0}', space=sflag, size = 0x4, scoped, tag = 'scoped memory for tpu_custom_call.1']
    #allocation4 [shape = 's32[1]{0}', space=sflag, size = 0x4, scoped, tag = 'scoped memory for tpu_custom_call.1']
    #allocation5 [shape = 'u8[4096]{0}', space=vmem, size = 0x1000, scoped, tag = 'output window, operand 0, single buffered']
    %7 = vsyncpa [#allocation3], 0
    %8 = vsyncpa [#allocation4], 0
    // Predicated region
    $region2: #{tpu_custom_call.1} parent=1 // pred_check
      _
    $region3: #{tpu_custom_call.1} parent=1 // pred_check_branch
      %10 = sbr.rel (0) target = $region5
    $region4: #{tpu_custom_call.1} parent=1 // pred_region
      _
    $region5: #{tpu_custom_call.1} parent=1 // pred_fallthru
      _
    // Predicated region
    $region6: #{tpu_custom_call.1} parent=1 // pred_check
      _
    $region7: #{tpu_custom_call.1} parent=1 // pred_check_branch
      %12 = sbr.rel (0) target = $region9
    $region8: #{tpu_custom_call.1} parent=1 // pred_region
      %14 = vsyncadd [#allocation3], 0
      %s15 = sshll.u32 %s1, 4
      %s16 = int_to_ptr.hbm [resolvable:$true] %s15
      %s17 = sshll.u32 [#allocation2], 4
      %s18 = int_to_ptr.vmem [resolvable:$true] %s17
      %23 = dma.hbm_to_vmem [thread:$0]  %s16, 4096, %s18, [#allocation3], 128, 128, 8
    $region9: #{tpu_custom_call.1} parent=1 // pred_fallthru
      _
    // Predicated region
    $region10: #{tpu_custom_call.1} parent=1 // pred_check
      _
    $region11: #{tpu_custom_call.1} parent=1 // pred_check_branch
      %25 = sbr.rel (0) target = $region13
    $region12: #{tpu_custom_call.1} parent=1 // pred_region
      %27 = dma.done [#allocation3], 4096
    $region13: #{tpu_custom_call.1} parent=1 // pred_fallthru
      _
    %v28 = vlaneseq
    %v29 = vand.u32 %v28, 127
    %v30 = vadd.s32 %v29, 128
    %v31 = vld [vmem:[%s0] sm:$0xff]
    %32 = vset.pattern.permute.xlu0 0
    %33 = vperm.xlu0 %32, %v31
    %v34 = vpop.permute.xlu0 %33
    %vm35 = vcmp.eq.s32.totalorder %v29, %v34
    %vm36 = vcmp.eq.s32.totalorder %v30, %v34
    %v37 = vsel %vm35, 1, 0
    %v38 = vsel %vm36, 1, 0
    %v39 = vcvt.s32.f32 %v37
    %v40 = vcvt.s32.f32 %v38
    %v41 = vadd.f32 %v39, 0.0
    %v42 = vadd.f32 %v40, 0.0
    %v43 = vadd.s32 %v31, 64
    %44 = vset.pattern.permute.xlu0 1
    %45 = vperm.xlu0 %44, %v43
    %v46 = vpop.permute.xlu0 %45
    %vm47 = vcmp.eq.s32.totalorder %v29, %v46
    %vm48 = vcmp.eq.s32.totalorder %v30, %v46
    %v49 = vsel %vm47, 1, 0
    %v50 = vsel %vm48, 1, 0
    %v51 = vcvt.s32.f32 %v49
    %v52 = vcvt.s32.f32 %v50
    %v53 = vadd.f32 %v41, %v51
    %v54 = vadd.f32 %v42, %v52
    %v55 = vadd.s32 %v31, 128
    %56 = vset.pattern.permute.xlu0 2
    %57 = vperm.xlu0 %56, %v55
    %v58 = vpop.permute.xlu0 %57
    %vm59 = vcmp.eq.s32.totalorder %v29, %v58
    %vm60 = vcmp.eq.s32.totalorder %v30, %v58
    %v61 = vsel %vm59, 1, 0
    %v62 = vsel %vm60, 1, 0
    %v63 = vcvt.s32.f32 %v61
    %v64 = vcvt.s32.f32 %v62
    %v65 = vadd.f32 %v53, %v63
    %v66 = vadd.f32 %v54, %v64
    %v67 = vadd.s32 %v31, 192
    %68 = vset.pattern.permute.xlu0 3
    %69 = vperm.xlu0 %68, %v67
    %v70 = vpop.permute.xlu0 %69
    %vm71 = vcmp.eq.s32.totalorder %v29, %v70
    %vm72 = vcmp.eq.s32.totalorder %v30, %v70
    %v73 = vsel %vm71, 1, 0
    %v74 = vsel %vm72, 1, 0
    %v75 = vcvt.s32.f32 %v73
    %v76 = vcvt.s32.f32 %v74
    %v77 = vadd.f32 %v65, %v75
    %v78 = vadd.f32 %v66, %v76
    %v79 = vld [vmem:[#allocation2] sm:$0xff]
    %v80 = vld [vmem:[#allocation2 + $0x8] sm:$0xff]
    %v81 = vld [vmem:[#allocation2 + $0x10] sm:$0xff]
    %v82 = vld [vmem:[#allocation2 + $0x18] sm:$0xff]
    %v83 = vld [vmem:[#allocation2 + $0x20] sm:$0xff]
    %v84 = vld [vmem:[#allocation2 + $0x28] sm:$0xff]
    %v85 = vld [vmem:[#allocation2 + $0x30] sm:$0xff]
    %v86 = vld [vmem:[#allocation2 + $0x38] sm:$0xff]
    %v87 = vld [vmem:[#allocation2 + $0x40] sm:$0xff]
    %v88 = vld [vmem:[#allocation2 + $0x48] sm:$0xff]
    %v89 = vld [vmem:[#allocation2 + $0x50] sm:$0xff]
    %v90 = vld [vmem:[#allocation2 + $0x58] sm:$0xff]
    %v91 = vld [vmem:[#allocation2 + $0x60] sm:$0xff]
    %v92 = vld [vmem:[#allocation2 + $0x68] sm:$0xff]
    %v93 = vld [vmem:[#allocation2 + $0x70] sm:$0xff]
    %v94 = vld [vmem:[#allocation2 + $0x78] sm:$0xff]
    %v95 = vld [vmem:[#allocation2 + $0x80] sm:$0xff]
    %v96 = vld [vmem:[#allocation2 + $0x88] sm:$0xff]
    %v97 = vld [vmem:[#allocation2 + $0x90] sm:$0xff]
    %v98 = vld [vmem:[#allocation2 + $0x98] sm:$0xff]
    %v99 = vld [vmem:[#allocation2 + $0xa0] sm:$0xff]
    %v100 = vld [vmem:[#allocation2 + $0xa8] sm:$0xff]
    %v101 = vld [vmem:[#allocation2 + $0xb0] sm:$0xff]
    %v102 = vld [vmem:[#allocation2 + $0xb8] sm:$0xff]
    %v103 = vld [vmem:[#allocation2 + $0xc0] sm:$0xff]
    %v104 = vld [vmem:[#allocation2 + $0xc8] sm:$0xff]
    %v105 = vld [vmem:[#allocation2 + $0xd0] sm:$0xff]
    %v106 = vld [vmem:[#allocation2 + $0xd8] sm:$0xff]
    %v107 = vld [vmem:[#allocation2 + $0xe0] sm:$0xff]
    %v108 = vld [vmem:[#allocation2 + $0xe8] sm:$0xff]
    %v109 = vld [vmem:[#allocation2 + $0xf0] sm:$0xff]
    %v110 = vld [vmem:[#allocation2 + $0xf8] sm:$0xff]
    %111 = vmatpush.msra.mxu0 %v94
    %112 = vmatpush.msra.mxu0 %v93
    %113 = vmatpush.msra.mxu0 %v92
    %114 = vmatpush.msra.mxu0 %v91
    %115 = vmatpush.msra.mxu0 %v90
    %116 = vmatpush.msra.mxu0 %v89
    %117 = vmatpush.msra.mxu0 %v88
    %118 = vmatpush.msra.mxu0 %v87
    %119 = vmatpush.msra.mxu0 %v86
    %120 = vmatpush.msra.mxu0 %v85
    %121 = vmatpush.msra.mxu0 %v84
    %122 = vmatpush.msra.mxu0 %v83
    %123 = vmatpush.msra.mxu0 %v82
    %124 = vmatpush.msra.mxu0 %v81
    %125 = vmatpush.msra.mxu0 %v80
    %126 = vmatpush.msra.mxu0 %v79
    %127 = vmatmul.f32.gmra.mxu0 %v77
    %v128 = vpop.f32.mrf.mxu0
    %v129 = vadd.f32 0.0, %v128
    %130 = vdwg.mxu0
    %131 = vmatpush.msra.mxu0 %v110
    %132 = vmatpush.msra.mxu0 %v109
    %133 = vmatpush.msra.mxu0 %v108
    %134 = vmatpush.msra.mxu0 %v107
    %135 = vmatpush.msra.mxu0 %v106
    %136 = vmatpush.msra.mxu0 %v105
    %137 = vmatpush.msra.mxu0 %v104
    %138 = vmatpush.msra.mxu0 %v103
    %139 = vmatpush.msra.mxu0 %v102
    %140 = vmatpush.msra.mxu0 %v101
    %141 = vmatpush.msra.mxu0 %v100
    %142 = vmatpush.msra.mxu0 %v99
    %143 = vmatpush.msra.mxu0 %v98
    %144 = vmatpush.msra.mxu0 %v97
    %145 = vmatpush.msra.mxu0 %v96
    %146 = vmatpush.msra.mxu0 %v95
    %147 = vmatmul.f32.gmra.mxu0 %v78
    %v148 = vpop.f32.mrf.mxu0
    %v149 = vadd.f32 %v129, %v148
    %150 = vdwg.mxu0
    %151 = vst [vmem:[#allocation5] sm:$0xff] %v149
    // Predicated region
    $region14: #{tpu_custom_call.1} parent=1 // pred_check
      _
    $region15: #{tpu_custom_call.1} parent=1 // pred_check_branch
      %153 = sbr.rel (0) target = $region17
    $region16: #{tpu_custom_call.1} parent=1 // pred_region
      %155 = vsyncadd [#allocation4], 0
      %s157 = sshll.u32 [#allocation5], 4
      %s158 = int_to_ptr.vmem [resolvable:$true] %s157
      %s159 = sshll.u32 %s2, 4
      %s160 = int_to_ptr.hbm [resolvable:$true] %s159
      %162 = dma.vmem_to_hbm [thread:$0]  %s158, 128, %s160, [#allocation4]
    $region17: #{tpu_custom_call.1} parent=1 // pred_fallthru
      _
    // Predicated region
    $region18: #{tpu_custom_call.1} parent=1 // pred_check
      _
    $region19: #{tpu_custom_call.1} parent=1 // pred_check_branch
      %164 = sbr.rel (0) target = $region21
    $region20: #{tpu_custom_call.1} parent=1 // pred_region
      %166 = dma.done [#allocation4], 128
    $region21: #{tpu_custom_call.1} parent=1 // pred_fallthru
      _
    %167 = vsyncpa [#allocation3], 1
    %168 = vsyncpa [#allocation4], 1

</llo_original>
